<compile_context>
chip_gen: v5e
topology: v5e:2x2
jax: 0.10.0
libtpu: 0.0.40
codegen_flags: <defaults>
</compile_context>

<pallas_src>
import functools

import jax
import jax.numpy as jnp
from jax.experimental import pallas as pl
from jax.experimental.pallas import tpu as pltpu

_LANE = 128
_SUBLANE = 8
_HIDDEN = 128


def _round_up(n, m):
    return ((n + m - 1) // m) * m


def _dqn_kernel(x_ref, w1_ref, b1_ref, w2_ref, b2_ref, w3_ref, b3_ref, o_ref):
    # Cast x to bf16 on-chip (VPU), no extra HBM pass in the wrapper.
    x = x_ref[...].astype(w1_ref.dtype)
    # Layer 1: Linear + ReLU. MXU matmul (bf16 in, f32 acc), f32 bias+ReLU.
    h1 = jnp.dot(x, w1_ref[...], preferred_element_type=jnp.float32)
    h1 = jnp.maximum(h1 + b1_ref[...], 0.0)
    # Layer 2: Linear + ReLU. Cast activations to bf16 only for the MXU input.
    h2 = jnp.dot(h1.astype(w2_ref.dtype), w2_ref[...],
                 preferred_element_type=jnp.float32)
    h2 = jnp.maximum(h2 + b2_ref[...], 0.0)
    # Layer 3: Linear (no activation). Output tile is lane-dense (padded to 128).
    out = jnp.dot(h2.astype(w3_ref.dtype), w3_ref[...],
                  preferred_element_type=jnp.float32)
    o_ref[...] = (out + b3_ref[...]).astype(o_ref.dtype)


def prepare_params(params, hidden=_HIDDEN):
    """One-time param prep: bf16 weight casts + lane padding of the last layer.

    Hoisted out of the forward pass so small-batch DQN inference pays no
    per-call padding/cast HBM traffic.
    """
    out_dim = int(params["w3"].shape[1])
    n_pad = _round_up(out_dim, _LANE)
    bf16 = jnp.bfloat16
    # Padded w3/b3 columns produce zeros that are sliced off by the wrapper.
    w3 = jnp.zeros((hidden, n_pad), bf16).at[:, :out_dim].set(
        params["w3"].astype(bf16))
    b3 = jnp.zeros((1, n_pad), jnp.float32).at[:, :out_dim].set(
        params["b3"].astype(jnp.float32))
    return {
        "w1": params["w1"].astype(bf16),
        "b1": params["b1"].astype(jnp.float32),
        "w2": params["w2"].astype(bf16),
        "b2": params["b2"].astype(jnp.float32),
        "w3": w3,
        "b3": b3,
        "out_dim": out_dim,
    }


@functools.partial(jax.jit, static_argnames=("out_dim", "tm"))
def _dqn_forward_impl(x, p, *, out_dim, tm):
    B, in_dim = x.shape
    hidden = p["w1"].shape[1]
    n_pad = p["w3"].shape[1]

    # Batch tile selection:
    #   * large (up to 2048) to amortize the ~0.35 us per-step overhead; working
    #     set stays a few MiB, far inside even v7x's 32 MiB scoped-VMEM default.
    #   * for medium/large batches ensure >=2 grid steps so the "parallel" batch
    #     axis can shard across v7x's 2 TensorCores (no effect on v5e/v6e).
    #   * always a multiple of 8 (sublane) so the BlockSpec lowers.
    if tm is None:
        b8 = _round_up(B, _SUBLANE)
        tm = min(2048, b8)
        if B >= 256:
            tm = min(tm, _round_up(-(-b8 // 2), _SUBLANE))
    tm = _round_up(int(tm), _SUBLANE)
    b_pad = _round_up(B, tm)

    # Only the batch dim is padded (cheap); feature dim is passed at its real
    # width and cast to bf16 inside the kernel.
    xp = x if b_pad == B else jnp.pad(x, ((0, b_pad - B), (0, 0)))

    grid = (b_pad // tm,)
    flops = 2 * b_pad * (in_dim * hidden + hidden * hidden + hidden * n_pad)
    bytes_accessed = (xp.size * 4
                      + (p["w1"].size + p["w2"].size + p["w3"].size) * 2
                      + (p["b1"].size + p["b2"].size + p["b3"].size) * 4
                      + b_pad * n_pad * 4)
    cost = pl.CostEstimate(flops=flops, transcendentals=0,
                           bytes_accessed=bytes_accessed)

    out = pl.pallas_call(
        _dqn_kernel,
        out_shape=jax.ShapeDtypeStruct((b_pad, n_pad), jnp.float32),
        grid_spec=pltpu.PrefetchScalarGridSpec(
            num_scalar_prefetch=0,
            grid=grid,
            in_specs=[
                # x tile: last dim equals the full array dim -> legal un-padded width.
                pl.BlockSpec((tm, in_dim), lambda i: (i, 0)),
                pl.BlockSpec((in_dim, hidden), lambda i: (0, 0)),  # w1 (resident)
                pl.BlockSpec((1, hidden), lambda i: (0, 0)),       # b1
                pl.BlockSpec((hidden, hidden), lambda i: (0, 0)),  # w2
                pl.BlockSpec((1, hidden), lambda i: (0, 0)),       # b2
                pl.BlockSpec((hidden, n_pad), lambda i: (0, 0)),   # w3 (lane-padded)
                pl.BlockSpec((1, n_pad), lambda i: (0, 0)),        # b3
            ],
            out_specs=pl.BlockSpec((tm, n_pad), lambda i: (i, 0)),
        ),
        compiler_params=pltpu.CompilerParams(
            dimension_semantics=("parallel",)),  # shards batch across TCs on v7x
        cost_estimate=cost,
    )(xp, p["w1"], p["b1"], p["w2"], p["b2"], p["w3"], p["b3"])

    return out[:B, :out_dim]


def dqn_forward(x, prep, *, tm=None):
    """x: (B, input_dim) f32. prep: output of prepare_params()."""
    arrays = {k: prep[k] for k in ("w1", "b1", "w2", "b2", "w3", "b3")}
    return _dqn_forward_impl(x, arrays, out_dim=prep["out_dim"], tm=tm)


def init_params(key, input_dim, output_dim, hidden=_HIDDEN):
    """Deterministic init matching PyTorch Linear shapes.
    PyTorch stores Linear.weight as (out, in); we pre-transpose to (in, out)."""
    ks = jax.random.split(key, 6)

    def linear(kw, kb, fan_in, fan_out):
        bound = 1.0 / jnp.sqrt(fan_in)
        w = jax.random.uniform(kw, (fan_in, fan_out), jnp.float32, -bound, bound)
        b = jax.random.uniform(kb, (1, fan_out), jnp.float32, -bound, bound)
        return w, b

    w1, b1 = linear(ks[0], ks[1], input_dim, hidden)
    w2, b2 = linear(ks[2], ks[3], hidden, hidden)
    w3, b3 = linear(ks[4], ks[5], hidden, output_dim)
    return {"w1": w1, "b1": b1, "w2": w2, "b2": b2, "w3": w3, "b3": b3}


def dqn_reference(x, p):
    h1 = jnp.maximum(x @ p["w1"] + p["b1"], 0.0)
    h2 = jnp.maximum(h1 @ p["w2"] + p["b2"], 0.0)
    return h2 @ p["w3"] + p["b3"]


if __name__ == "__main__":
    key = jax.random.PRNGKey(0)
    k_x, k_p, k_x2, k_x3 = jax.random.split(key, 4)

    batch, input_dim, output_dim = 8, 32, 4
    params = init_params(k_p, input_dim, output_dim)
    prep = prepare_params(params)  # one-time padding / bf16 cast

    # Case 1: batch aligned to sublanes, single grid step.
    x = jax.random.normal(k_x, (batch, input_dim), jnp.float32)
    out = jax.block_until_ready(dqn_forward(x, prep))
    ref = dqn_reference(x, params)
    assert out.shape == (batch, output_dim)
    # bf16 matmul inputs vs. f32 reference -> relaxed tolerance.
    assert jnp.allclose(out, ref, atol=2e-2, rtol=2e-2), (
        float(jnp.max(jnp.abs(out - ref))))

    # Case 2: ragged batch (exercises batch-pad + slice path).
    x2 = jax.random.normal(k_x2, (5, input_dim), jnp.float32)
    out2 = jax.block_until_ready(dqn_forward(x2, prep))
    ref2 = dqn_reference(x2, params)
    assert out2.shape == (5, output_dim)
    assert jnp.allclose(out2, ref2, atol=2e-2, rtol=2e-2), (
        float(jnp.max(jnp.abs(out2 - ref2))))

    # Case 3: explicit small tile -> multi-step grid (exercises the parallel axis).
    x3 = jax.random.normal(k_x3, (24, input_dim), jnp.float32)
    out3 = jax.block_until_ready(dqn_forward(x3, prep, tm=8))
    ref3 = dqn_reference(x3, params)
    assert out3.shape == (24, output_dim)
    assert jnp.allclose(out3, ref3, atol=2e-2, rtol=2e-2), (
        float(jnp.max(jnp.abs(out3 - ref3))))

    print("KERNEL_OK")
</pallas_src>

<mosaic_0001>
module attributes {stable_mosaic.version = 11 : i64} {
  func.func @_dqn_kernel(%arg0: i32, %arg1: memref<8x32xf32, #tpu.memory_space<vmem>>, %arg2: memref<32x128xbf16, #tpu.memory_space<vmem>>, %arg3: memref<1x128xf32, #tpu.memory_space<vmem>>, %arg4: memref<128x128xbf16, #tpu.memory_space<vmem>>, %arg5: memref<1x128xf32, #tpu.memory_space<vmem>>, %arg6: memref<128x128xbf16, #tpu.memory_space<vmem>>, %arg7: memref<1x128xf32, #tpu.memory_space<vmem>>, %arg8: memref<8x128xf32, #tpu.memory_space<vmem>>) attributes {dimension_semantics = [#tpu.dimension_semantics<parallel>], iteration_bounds = array<i64: 1>, scalar_prefetch = 0 : i64, scratch_operands = 0 : i64, tpu.core_type = #tpu.core_type<tc>, window_params = [{transform_indices = @transform_0, window_bounds = array<i64: 8, 32>}, {pipeline_mode = #tpu.pipeline_mode<synchronous>, transform_indices = @transform_1, window_bounds = array<i64: 32, 128>}, {pipeline_mode = #tpu.pipeline_mode<synchronous>, transform_indices = @transform_2, window_bounds = array<i64: 1, 128>}, {pipeline_mode = #tpu.pipeline_mode<synchronous>, transform_indices = @transform_3, window_bounds = array<i64: 128, 128>}, {pipeline_mode = #tpu.pipeline_mode<synchronous>, transform_indices = @transform_4, window_bounds = array<i64: 1, 128>}, {pipeline_mode = #tpu.pipeline_mode<synchronous>, transform_indices = @transform_5, window_bounds = array<i64: 128, 128>}, {pipeline_mode = #tpu.pipeline_mode<synchronous>, transform_indices = @transform_6, window_bounds = array<i64: 1, 128>}, {transform_indices = @transform_7, window_bounds = array<i64: 8, 128>}]} {
    %c0 = arith.constant 0 : index
    %c0_0 = arith.constant 0 : index
    %0 = vector.load %arg1[%c0, %c0_0] : memref<8x32xf32, #tpu.memory_space<vmem>>, vector<8x32xf32>
    %1 = arith.truncf %0 : vector<8x32xf32> to vector<8x32xbf16>
    %c0_1 = arith.constant 0 : index
    %c0_2 = arith.constant 0 : index
    %2 = vector.load %arg2[%c0_1, %c0_2] : memref<32x128xbf16, #tpu.memory_space<vmem>>, vector<32x128xbf16>
    %cst = arith.constant dense<0.000000e+00> : vector<8x128xf32>
    %3 = tpu.matmul %1, %2, %cst {dimension_numbers = #tpu.dot_dimension_numbers<[1], [0], [0], [1], [0, 0, 1, 1], [], []>} : vector<8x32xbf16>, vector<32x128xbf16>, vector<8x128xf32> -> vector<8x128xf32>
    %c0_3 = arith.constant 0 : index
    %c0_4 = arith.constant 0 : index
    %4 = vector.load %arg3[%c0_3, %c0_4] : memref<1x128xf32, #tpu.memory_space<vmem>>, vector<1x128xf32>
    %5 = vector.broadcast %4 : vector<1x128xf32> to vector<8x128xf32>
    %6 = arith.addf %3, %5 : vector<8x128xf32>
    %cst_5 = arith.constant 0.000000e+00 : f32
    %7 = vector.broadcast %cst_5 : f32 to vector<8x128xf32>
    %8 = arith.maximumf %6, %7 : vector<8x128xf32>
    %9 = arith.truncf %8 : vector<8x128xf32> to vector<8x128xbf16>
    %c0_6 = arith.constant 0 : index
    %c0_7 = arith.constant 0 : index
    %10 = vector.load %arg4[%c0_6, %c0_7] : memref<128x128xbf16, #tpu.memory_space<vmem>>, vector<128x128xbf16>
    %cst_8 = arith.constant dense<0.000000e+00> : vector<8x128xf32>
    %11 = tpu.matmul %9, %10, %cst_8 {dimension_numbers = #tpu.dot_dimension_numbers<[1], [0], [0], [1], [0, 0, 1, 1], [], []>} : vector<8x128xbf16>, vector<128x128xbf16>, vector<8x128xf32> -> vector<8x128xf32>
    %c0_9 = arith.constant 0 : index
    %c0_10 = arith.constant 0 : index
    %12 = vector.load %arg5[%c0_9, %c0_10] : memref<1x128xf32, #tpu.memory_space<vmem>>, vector<1x128xf32>
    %13 = vector.broadcast %12 : vector<1x128xf32> to vector<8x128xf32>
    %14 = arith.addf %11, %13 : vector<8x128xf32>
    %cst_11 = arith.constant 0.000000e+00 : f32
    %15 = vector.broadcast %cst_11 : f32 to vector<8x128xf32>
    %16 = arith.maximumf %14, %15 : vector<8x128xf32>
    %17 = arith.truncf %16 : vector<8x128xf32> to vector<8x128xbf16>
    %c0_12 = arith.constant 0 : index
    %c0_13 = arith.constant 0 : index
    %18 = vector.load %arg6[%c0_12, %c0_13] : memref<128x128xbf16, #tpu.memory_space<vmem>>, vector<128x128xbf16>
    %cst_14 = arith.constant dense<0.000000e+00> : vector<8x128xf32>
    %19 = tpu.matmul %17, %18, %cst_14 {dimension_numbers = #tpu.dot_dimension_numbers<[1], [0], [0], [1], [0, 0, 1, 1], [], []>} : vector<8x128xbf16>, vector<128x128xbf16>, vector<8x128xf32> -> vector<8x128xf32>
    %c0_15 = arith.constant 0 : index
    %c0_16 = arith.constant 0 : index
    %20 = vector.load %arg7[%c0_15, %c0_16] : memref<1x128xf32, #tpu.memory_space<vmem>>, vector<1x128xf32>
    %21 = vector.broadcast %20 : vector<1x128xf32> to vector<8x128xf32>
    %22 = arith.addf %19, %21 : vector<8x128xf32>
    %c0_17 = arith.constant 0 : index
    %c0_18 = arith.constant 0 : index
    %23 = vector.load %arg8[%c0_17, %c0_18] : memref<8x128xf32, #tpu.memory_space<vmem>>, vector<8x128xf32>
    tpu.vector_store %arg8[%c0_17, %c0_18], %22 {strides = array<i32>} : memref<8x128xf32, #tpu.memory_space<vmem>>, vector<8x128xf32>,
    return
  }
  func.func @transform_0(%arg0: i32) -> (i32, i32) {
    %c0_i32 = arith.constant 0 : i32
    %c0_i32_0 = arith.constant 0 : i32
    return %arg0, %c0_i32 : i32, i32
  }
  func.func @transform_1(%arg0: i32) -> (i32, i32) {
    %c0_i32 = arith.constant 0 : i32
    %c0_i32_0 = arith.constant 0 : i32
    %c0_i32_1 = arith.constant 0 : i32
    return %c0_i32, %c0_i32_0 : i32, i32
  }
  func.func @transform_2(%arg0: i32) -> (i32, i32) {
    %c0_i32 = arith.constant 0 : i32
    %c0_i32_0 = arith.constant 0 : i32
    %c0_i32_1 = arith.constant 0 : i32
    return %c0_i32, %c0_i32_0 : i32, i32
  }
  func.func @transform_3(%arg0: i32) -> (i32, i32) {
    %c0_i32 = arith.constant 0 : i32
    %c0_i32_0 = arith.constant 0 : i32
    %c0_i32_1 = arith.constant 0 : i32
    return %c0_i32, %c0_i32_0 : i32, i32
  }
  func.func @transform_4(%arg0: i32) -> (i32, i32) {
    %c0_i32 = arith.constant 0 : i32
    %c0_i32_0 = arith.constant 0 : i32
    %c0_i32_1 = arith.constant 0 : i32
    return %c0_i32, %c0_i32_0 : i32, i32
  }
  func.func @transform_5(%arg0: i32) -> (i32, i32) {
    %c0_i32 = arith.constant 0 : i32
    %c0_i32_0 = arith.constant 0 : i32
    %c0_i32_1 = arith.constant 0 : i32
    return %c0_i32, %c0_i32_0 : i32, i32
  }
  func.func @transform_6(%arg0: i32) -> (i32, i32) {
    %c0_i32 = arith.constant 0 : i32
    %c0_i32_0 = arith.constant 0 : i32
    %c0_i32_1 = arith.constant 0 : i32
    return %c0_i32, %c0_i32_0 : i32, i32
  }
  func.func @transform_7(%arg0: i32) -> (i32, i32) {
    %c0_i32 = arith.constant 0 : i32
    %c0_i32_0 = arith.constant 0 : i32
    return %arg0, %c0_i32 : i32, i32
  }
}

</mosaic_0001>

<llo_original>
// kernel: _dqn_forward_impl.1
$region0: #{_dqn_forward_impl.1}
  #allocation0 [shape = 'u32[]', space=smem, size = 0x4, offset = 0x4, fixed_abs, tag = 'smem constant byte address 0x4 - core index']
  #allocation1 [shape = 'u32[72,128]{1,0:T(1,128)}', space=vmem, size = 0x9000, scoped, tag = 'internal scratch']
  %s0 = inlined_call_operand.hbm [shape: f32[8,32], index: 0, kind: input, shape index: {}]
  %s1 = inlined_call_operand.hbm [shape: bf16[32,128], index: 1, kind: input, shape index: {}]
  %s2 = inlined_call_operand.hbm [shape: f32[1,128], index: 2, kind: input, shape index: {}]
  %s3 = inlined_call_operand.hbm [shape: bf16[128,128], index: 3, kind: input, shape index: {}]
  %s4 = inlined_call_operand.vmem [shape: f32[1,128], index: 4, kind: input, shape index: {}]
  %s5 = inlined_call_operand.hbm [shape: bf16[128,128], index: 5, kind: input, shape index: {}]
  %s6 = inlined_call_operand.vmem [shape: f32[1,128], index: 6, kind: input, shape index: {}]
  %s7 = inlined_call_operand.vmem [shape: f32[8,128], index: 7, kind: output, shape index: {}]
  %s8 = sld [smem:[#allocation0]]
  $region58: #{_dqn_forward_impl.1} parent=0
    _
  %s10 = ssub.s32 1, %s8
  %s11 = scalar_select 0, %s10, %s8
  $region1: #{_dqn_forward_impl.1} parent=0
    #allocation2 [shape = 'u8[4096]{0}', space=vmem, size = 0x1000, scoped, tag = 'input window, operand 0, single buffered']
    #allocation3 [shape = 's32[1]{0}', space=sflag, size = 0x4, scoped, tag = 'scoped memory for _dqn_forward_impl.1']
    #allocation4 [shape = 'u8[8192]{0}', space=vmem, size = 0x2000, scoped, tag = 'input window, operand 1, single buffered']
    #allocation5 [shape = 's32[1]{0}', space=sflag, size = 0x4, scoped, tag = 'scoped memory for _dqn_forward_impl.1']
    #allocation6 [shape = 'u8[512]{0}', space=vmem, size = 0x400, scoped, tag = 'input window, operand 2, single buffered']
    #allocation7 [shape = 'u8[32768]{0}', space=vmem, size = 0x8000, scoped, tag = 'input window, operand 3, single buffered']
    #allocation8 [shape = 's32[1]{0}', space=sflag, size = 0x4, scoped, tag = 'scoped memory for _dqn_forward_impl.1']
    #allocation9 [shape = 'u8[32768]{0}', space=vmem, size = 0x8000, scoped, tag = 'input window, operand 5, single buffered']
    %12 = vsyncpa [#allocation3], 0
    %13 = vsyncpa [#allocation5], 0
    %14 = vsyncpa [#allocation8], 0
    // Predicated region
    $region2: #{_dqn_forward_impl.1} parent=1 // pred_check
      _
    $region3: #{_dqn_forward_impl.1} parent=1 // pred_check_branch
      %16 = sbr.rel (0) target = $region5
    $region4: #{_dqn_forward_impl.1} parent=1 // pred_region
      %18 = vsyncadd [#allocation3], 0
      %s20 = sshll.u32 %s0, 4
      %s21 = int_to_ptr.hbm [resolvable:$true] %s20
      %s22 = sshll.u32 [#allocation2], 4
      %s23 = int_to_ptr.vmem [resolvable:$true] %s22
      %25 = dma.hbm_to_vmem [thread:$0]  %s21, 128, %s23, [#allocation3]
    $region5: #{_dqn_forward_impl.1} parent=1 // pred_fallthru
      _
    // Predicated region
    $region6: #{_dqn_forward_impl.1} parent=1 // pred_check
      _
    $region7: #{_dqn_forward_impl.1} parent=1 // pred_check_branch
      %27 = sbr.rel (0) target = $region9
    $region8: #{_dqn_forward_impl.1} parent=1 // pred_region
      %29 = vsyncadd [#allocation5], 0
      %s30 = sshll.u32 %s1, 4
      %s31 = int_to_ptr.hbm [resolvable:$true] %s30
      %s32 = sshll.u32 [#allocation4], 4
      %s33 = int_to_ptr.vmem [resolvable:$true] %s32
      %38 = dma.hbm_to_vmem [thread:$0]  %s31, 256, %s33, [#allocation5], 64, 64, 4
    $region9: #{_dqn_forward_impl.1} parent=1 // pred_fallthru
      _
    // Predicated region
    $region10: #{_dqn_forward_impl.1} parent=1 // pred_check
      _
    $region11: #{_dqn_forward_impl.1} parent=1 // pred_check_branch
      %40 = sbr.rel (0) target = $region13
    $region12: #{_dqn_forward_impl.1} parent=1 // pred_region
      %42 = vsyncadd [#allocation5], 0
      %s44 = sshll.u32 %s2, 4
      %s45 = int_to_ptr.hbm [resolvable:$true] %s44
      %s46 = sshll.u32 [#allocation6], 4
      %s47 = int_to_ptr.vmem [resolvable:$true] %s46
      %49 = dma.hbm_to_vmem [thread:$0]  %s45, 16, %s47, [#allocation5]
    $region13: #{_dqn_forward_impl.1} parent=1 // pred_fallthru
      _
    // Predicated region
    $region14: #{_dqn_forward_impl.1} parent=1 // pred_check
      _
    $region15: #{_dqn_forward_impl.1} parent=1 // pred_check_branch
      %51 = sbr.rel (0) target = $region17
    $region16: #{_dqn_forward_impl.1} parent=1 // pred_region
      %53 = vsyncadd [#allocation8], 0
      %s54 = sshll.u32 %s3, 4
      %s55 = int_to_ptr.hbm [resolvable:$true] %s54
      %s56 = sshll.u32 [#allocation7], 4
      %s57 = int_to_ptr.vmem [resolvable:$true] %s56
      %62 = dma.hbm_to_vmem [thread:$0]  %s55, 1024, %s57, [#allocation8], 64, 64, 4
    $region17: #{_dqn_forward_impl.1} parent=1 // pred_fallthru
      _
    // Predicated region
    $region18: #{_dqn_forward_impl.1} parent=1 // pred_check
      _
    $region19: #{_dqn_forward_impl.1} parent=1 // pred_check_branch
      %64 = sbr.rel (0) target = $region21
    $region20: #{_dqn_forward_impl.1} parent=1 // pred_region
      _
    $region21: #{_dqn_forward_impl.1} parent=1 // pred_fallthru
      _
    // Predicated region
    $region22: #{_dqn_forward_impl.1} parent=1 // pred_check
      _
    $region23: #{_dqn_forward_impl.1} parent=1 // pred_check_branch
      %66 = sbr.rel (0) target = $region25
    $region24: #{_dqn_forward_impl.1} parent=1 // pred_region
      %68 = vsyncadd [#allocation8], 0
      %s69 = sshll.u32 %s5, 4
      %s70 = int_to_ptr.hbm [resolvable:$true] %s69
      %s71 = sshll.u32 [#allocation9], 4
      %s72 = int_to_ptr.vmem [resolvable:$true] %s71
      %77 = dma.hbm_to_vmem [thread:$0]  %s70, 1024, %s72, [#allocation8], 64, 64, 4
    $region25: #{_dqn_forward_impl.1} parent=1 // pred_fallthru
      _
    // Predicated region
    $region26: #{_dqn_forward_impl.1} parent=1 // pred_check
      _
    $region27: #{_dqn_forward_impl.1} parent=1 // pred_check_branch
      %79 = sbr.rel (0) target = $region29
    $region28: #{_dqn_forward_impl.1} parent=1 // pred_region
      _
    $region29: #{_dqn_forward_impl.1} parent=1 // pred_fallthru
      _
    // Predicated region
    $region30: #{_dqn_forward_impl.1} parent=1 // pred_check
      _
    $region31: #{_dqn_forward_impl.1} parent=1 // pred_check_branch
      %81 = sbr.rel (0) target = $region33
    $region32: #{_dqn_forward_impl.1} parent=1 // pred_region
      %83 = dma.done [#allocation3], 128
    $region33: #{_dqn_forward_impl.1} parent=1 // pred_fallthru
      _
    // Predicated region
    $region34: #{_dqn_forward_impl.1} parent=1 // pred_check
      _
    $region35: #{_dqn_forward_impl.1} parent=1 // pred_check_branch
      %85 = sbr.rel (0) target = $region37
    $region36: #{_dqn_forward_impl.1} parent=1 // pred_region
      %87 = dma.done [#allocation5], 256
    $region37: #{_dqn_forward_impl.1} parent=1 // pred_fallthru
      _
    // Predicated region
    $region38: #{_dqn_forward_impl.1} parent=1 // pred_check
      _
    $region39: #{_dqn_forward_impl.1} parent=1 // pred_check_branch
      %89 = sbr.rel (0) target = $region41
    $region40: #{_dqn_forward_impl.1} parent=1 // pred_region
      %91 = dma.done [#allocation5], 16
    $region41: #{_dqn_forward_impl.1} parent=1 // pred_fallthru
      _
    // Predicated region
    $region42: #{_dqn_forward_impl.1} parent=1 // pred_check
      _
    $region43: #{_dqn_forward_impl.1} parent=1 // pred_check_branch
      %93 = sbr.rel (0) target = $region45
    $region44: #{_dqn_forward_impl.1} parent=1 // pred_region
      %95 = dma.done [#allocation8], 1024
    $region45: #{_dqn_forward_impl.1} parent=1 // pred_fallthru
      _
    // Predicated region
    $region46: #{_dqn_forward_impl.1} parent=1 // pred_check
      _
    $region47: #{_dqn_forward_impl.1} parent=1 // pred_check_branch
      %97 = sbr.rel (0) target = $region49
    $region48: #{_dqn_forward_impl.1} parent=1 // pred_region
      %99 = dma.done [#allocation8], 1024
    $region49: #{_dqn_forward_impl.1} parent=1 // pred_fallthru
      _
    %v101 = vld [vmem:[#allocation2] sm:$0xff]
    %v102 = vpack.c.bf16 %v101, %v101
    %v103 = vld [vmem:[#allocation4] sm:$0xf]
    %v104 = vld [vmem:[#allocation4 + $0x4] sm:$0xf]
    %v105 = vld [vmem:[#allocation4 + $0x8] sm:$0xf]
    %v106 = vld [vmem:[#allocation4 + $0xc] sm:$0xf]
    %v107 = vld [vmem:[#allocation6] sm:$0x1]
    %v109 = vperm.slane %v107, 0
    %v115 = vunpack.c.l.b16 %v103
    %v116 = vunpack.c.l.b16 %v104
    %v117 = vunpack.c.l.b16 %v105
    %v118 = vunpack.c.l.b16 %v106
    %v119 = vpack.c.b16 %v116, %v115
    %v120 = vpack.c.b16 %v118, %v117
    %vm123 = vcmask 261120
    %v125 = vsel %vm123, %v102, 0
    %127 = vmatpush.bf16.msra.mxu0 0
    %128 = vmatpush.bf16.msra.mxu0 0
    %129 = vmatpush.bf16.msra.mxu0 0
    %130 = vmatpush.bf16.msra.mxu0 0
    %131 = vmatpush.bf16.msra.mxu0 0
    %132 = vmatpush.bf16.msra.mxu0 0
    %133 = vmatpush.bf16.msra.mxu0 %v120
    %134 = vmatpush.bf16.msra.mxu0 %v119
    %135 = vmatmul.bf16.gmra.mxu0 %v125
    %v136 = vpop.f32.mrf.mxu0
    %v137 = vadd.f32 %v109, %v136
    %v138 = vpop.f32.mrf.mxu0
    %139 = vdwg.mxu0
    %v140 = vmax.f32 %v137, 0.0
    %v141 = vpack.c.bf16 %v140, %v140
    %v142 = vld [vmem:[#allocation7] sm:$0xf]
    %v143 = vld [vmem:[#allocation7 + $0x4] sm:$0xf]
    %v144 = vld [vmem:[#allocation7 + $0x8] sm:$0xf]
    %v145 = vld [vmem:[#allocation7 + $0xc] sm:$0xf]
    %v146 = vld [vmem:[#allocation7 + $0x10] sm:$0xf]
    %v147 = vld [vmem:[#allocation7 + $0x14] sm:$0xf]
    %v148 = vld [vmem:[#allocation7 + $0x18] sm:$0xf]
    %v149 = vld [vmem:[#allocation7 + $0x1c] sm:$0xf]
    %v150 = vld [vmem:[#allocation7 + $0x20] sm:$0xf]
    %v151 = vld [vmem:[#allocation7 + $0x24] sm:$0xf]
    %v152 = vld [vmem:[#allocation7 + $0x28] sm:$0xf]
    %v153 = vld [vmem:[#allocation7 + $0x2c] sm:$0xf]
    %v154 = vld [vmem:[#allocation7 + $0x30] sm:$0xf]
    %v155 = vld [vmem:[#allocation7 + $0x34] sm:$0xf]
    %v156 = vld [vmem:[#allocation7 + $0x38] sm:$0xf]
    %v157 = vld [vmem:[#allocation7 + $0x3c] sm:$0xf]
    %v158 = vld [vmem:[%s4] sm:$0x1]
    %v160 = vperm.slane %v158, 0
    %v178 = vunpack.c.l.b16 %v142
    %v179 = vunpack.c.l.b16 %v143
    %v180 = vunpack.c.l.b16 %v144
    %v181 = vunpack.c.l.b16 %v145
    %v182 = vunpack.c.l.b16 %v146
    %v183 = vunpack.c.l.b16 %v147
    %v184 = vunpack.c.l.b16 %v148
    %v185 = vunpack.c.l.b16 %v149
    %v186 = vunpack.c.l.b16 %v150
    %v187 = vunpack.c.l.b16 %v151
    %v188 = vunpack.c.l.b16 %v152
    %v189 = vunpack.c.l.b16 %v153
    %v190 = vunpack.c.l.b16 %v154
    %v191 = vunpack.c.l.b16 %v155
    %v192 = vunpack.c.l.b16 %v156
    %v193 = vunpack.c.l.b16 %v157
    %v194 = vpack.c.b16 %v179, %v178
    %v195 = vpack.c.b16 %v181, %v180
    %v196 = vpack.c.b16 %v183, %v182
    %v197 = vpack.c.b16 %v185, %v184
    %v198 = vpack.c.b16 %v187, %v186
    %v199 = vpack.c.b16 %v189, %v188
    %v200 = vpack.c.b16 %v191, %v190
    %v201 = vpack.c.b16 %v193, %v192
    %210 = vmatpush.bf16.msra.mxu0 %v201
    %211 = vmatpush.bf16.msra.mxu0 %v200
    %212 = vmatpush.bf16.msra.mxu0 %v199
    %213 = vmatpush.bf16.msra.mxu0 %v198
    %214 = vmatpush.bf16.msra.mxu0 %v197
    %215 = vmatpush.bf16.msra.mxu0 %v196
    %216 = vmatpush.bf16.msra.mxu0 %v195
    %217 = vmatpush.bf16.msra.mxu0 %v194
    %218 = vmatmul.bf16.gmra.mxu0 %v141
    %v219 = vpop.f32.mrf.mxu0
    %v220 = vadd.f32 %v160, %v219
    %v221 = vpop.f32.mrf.mxu0
    %222 = vdwg.mxu0
    %v223 = vmax.f32 %v220, 0.0
    %v224 = vpack.c.bf16 %v223, %v223
    %v225 = vld [vmem:[#allocation9] sm:$0xf]
    %v226 = vld [vmem:[#allocation9 + $0x4] sm:$0xf]
    %v227 = vld [vmem:[#allocation9 + $0x8] sm:$0xf]
    %v228 = vld [vmem:[#allocation9 + $0xc] sm:$0xf]
    %v229 = vld [vmem:[#allocation9 + $0x10] sm:$0xf]
    %v230 = vld [vmem:[#allocation9 + $0x14] sm:$0xf]
    %v231 = vld [vmem:[#allocation9 + $0x18] sm:$0xf]
    %v232 = vld [vmem:[#allocation9 + $0x1c] sm:$0xf]
    %v233 = vld [vmem:[#allocation9 + $0x20] sm:$0xf]
    %v234 = vld [vmem:[#allocation9 + $0x24] sm:$0xf]
    %v235 = vld [vmem:[#allocation9 + $0x28] sm:$0xf]
    %v236 = vld [vmem:[#allocation9 + $0x2c] sm:$0xf]
    %v237 = vld [vmem:[#allocation9 + $0x30] sm:$0xf]
    %v238 = vld [vmem:[#allocation9 + $0x34] sm:$0xf]
    %v239 = vld [vmem:[#allocation9 + $0x38] sm:$0xf]
    %v240 = vld [vmem:[#allocation9 + $0x3c] sm:$0xf]
    %v241 = vld [vmem:[%s6] sm:$0x1]
    %v243 = vperm.slane %v241, 0
    %v261 = vunpack.c.l.b16 %v225
    %v262 = vunpack.c.l.b16 %v226
    %v263 = vunpack.c.l.b16 %v227
    %v264 = vunpack.c.l.b16 %v228
    %v265 = vunpack.c.l.b16 %v229
    %v266 = vunpack.c.l.b16 %v230
    %v267 = vunpack.c.l.b16 %v231
    %v268 = vunpack.c.l.b16 %v232
    %v269 = vunpack.c.l.b16 %v233
    %v270 = vunpack.c.l.b16 %v234
    %v271 = vunpack.c.l.b16 %v235
    %v272 = vunpack.c.l.b16 %v236
    %v273 = vunpack.c.l.b16 %v237
    %v274 = vunpack.c.l.b16 %v238
    %v275 = vunpack.c.l.b16 %v239
    %v276 = vunpack.c.l.b16 %v240
    %v277 = vpack.c.b16 %v262, %v261
    %v278 = vpack.c.b16 %v264, %v263
    %v279 = vpack.c.b16 %v266, %v265
    %v280 = vpack.c.b16 %v268, %v267
    %v281 = vpack.c.b16 %v270, %v269
    %v282 = vpack.c.b16 %v272, %v271
    %v283 = vpack.c.b16 %v274, %v273
    %v284 = vpack.c.b16 %v276, %v275
    %293 = vmatpush.bf16.msra.mxu0 %v284
    %294 = vmatpush.bf16.msra.mxu0 %v283
    %295 = vmatpush.bf16.msra.mxu0 %v282
    %296 = vmatpush.bf16.msra.mxu0 %v281
    %297 = vmatpush.bf16.msra.mxu0 %v280
    %298 = vmatpush.bf16.msra.mxu0 %v279
    %299 = vmatpush.bf16.msra.mxu0 %v278
    %300 = vmatpush.bf16.msra.mxu0 %v277
    %301 = vmatmul.bf16.gmra.mxu0 %v224
    %v302 = vpop.f32.mrf.mxu0
    %v303 = vadd.f32 %v243, %v302
    %v304 = vpop.f32.mrf.mxu0
    %305 = vdwg.mxu0
    %306 = vst [vmem:[%s7] sm:$0xff] %v303
    // Predicated region
    $region50: #{_dqn_forward_impl.1} parent=1 // pred_check
      _
    $region51: #{_dqn_forward_impl.1} parent=1 // pred_check_branch
      %308 = sbr.rel (0) target = $region53
    $region52: #{_dqn_forward_impl.1} parent=1 // pred_region
      _
    $region53: #{_dqn_forward_impl.1} parent=1 // pred_fallthru
      _
    // Predicated region
    $region54: #{_dqn_forward_impl.1} parent=1 // pred_check
      _
    $region55: #{_dqn_forward_impl.1} parent=1 // pred_check_branch
      %310 = sbr.rel (0) target = $region57
    $region56: #{_dqn_forward_impl.1} parent=1 // pred_region
      _
    $region57: #{_dqn_forward_impl.1} parent=1 // pred_fallthru
      _
    %311 = vsyncpa [#allocation3], 1
    %312 = vsyncpa [#allocation5], 1
    %313 = vsyncpa [#allocation8], 1

</llo_original>
